<compile_context>
chip_gen: v6e
topology: v6e:2x2x1
jax: 0.10.0
libtpu: 0.0.40
codegen_flags: <defaults>
</compile_context>

<pallas_src>
import functools

import jax
import jax.numpy as jnp
from jax import lax
from jax.experimental import pallas as pl
from jax.experimental.pallas import tpu as pltpu


# ---------------------------------------------------------------------------
# Pallas kernel
# ---------------------------------------------------------------------------

def _instance_norm_kernel(x_ref, g_ref, b_ref, o_ref, *, eps):
    # x block: (1, CF, tT) (one batch element, one T tile); gamma/beta: (1, CF, 1).
    # Normalize over the CF (sublane) axis per time column, then affine.
    # Columns are independent, so T tiling needs no accumulator and any padded
    # lanes in a partial last tile never contaminate in-bounds columns.
    x = x_ref[...].astype(jnp.float32)                    # cast per-tile in VMEM
    mean = jnp.mean(x, axis=1, keepdims=True)             # (1, 1, tT)
    d = x - mean
    var = jnp.mean(d * d, axis=1, keepdims=True)          # (1, 1, tT)
    inv_std = lax.rsqrt(var + eps)                        # EUP rsqrt (free slot)
    y = d * inv_std * g_ref[...] + b_ref[...]
    o_ref[...] = y.astype(o_ref.dtype)


# ---------------------------------------------------------------------------
# Wrapper
# ---------------------------------------------------------------------------

def _pick_t_tile(CF, T):
    """T tile: multiple of 128, <= ~1M f32 elems per buffer (v5e-safe)."""
    if T % 128 != 0:
        # (8,128) rule: a non-multiple-of-128 last dim must be taken at full extent.
        return T
    max_elems = 1 << 20                                   # ~4 MiB f32 per buffer
    tT = max(128, (max_elems // max(CF, 1)) // 128 * 128)
    return min(T, tT)


def instance_norm(x, gamma, beta, eps=float(jnp.finfo(jnp.float32).eps)):
    """x: (B, C, F, T); gamma, beta: (C*F,).  Returns (B, C, F, T) in x.dtype."""
    B, C, F, T = x.shape
    CF = C * F
    x3 = x.reshape(B, CF, T)                              # free reshape (no copy)
    g3 = gamma.astype(jnp.float32).reshape(1, CF, 1)
    b3 = beta.astype(jnp.float32).reshape(1, CF, 1)

    tT = _pick_t_tile(CF, T)
    nT = pl.cdiv(T, tT)

    out = pl.pallas_call(
        functools.partial(_instance_norm_kernel, eps=eps),
        out_shape=jax.ShapeDtypeStruct((B, CF, T), x.dtype),
        grid=(B, nT),
        in_specs=[
            pl.BlockSpec((1, CF, tT), lambda b, t: (b, 0, t)),
            pl.BlockSpec((1, CF, 1), lambda b, t: (0, 0, 0)),
            pl.BlockSpec((1, CF, 1), lambda b, t: (0, 0, 0)),
        ],
        out_specs=pl.BlockSpec((1, CF, tT), lambda b, t: (b, 0, t)),
        compiler_params=pltpu.CompilerParams(
            dimension_semantics=("parallel", "parallel")),
    )(x3, g3, b3)
    return out.reshape(B, C, F, T)


# ---------------------------------------------------------------------------
# Pure-JAX reference (mirrors the PyTorch forward exactly, permutes included)
# ---------------------------------------------------------------------------

def instance_norm_reference(x, gamma, beta,
                            eps=float(jnp.finfo(jnp.float32).eps)):
    B, C, F, T = x.shape
    xt = jnp.transpose(x, (0, 3, 1, 2)).reshape(B, T, C * F).astype(jnp.float32)
    mean = jnp.mean(xt, axis=-1, keepdims=True)
    var = jnp.mean(jnp.square(xt - mean), axis=-1, keepdims=True)
    std = jnp.sqrt(var + eps)
    out = (xt - mean) / std
    out = out * gamma + beta
    out = out.reshape(B, T, C, F)
    return jnp.transpose(out, (0, 2, 3, 1)).astype(x.dtype)


# ---------------------------------------------------------------------------

if __name__ == "__main__":
    key = jax.random.PRNGKey(0)
    B, C, F = 2, 4, 16
    feats = C * F

    k_x, k_g, k_b, k_x2 = jax.random.split(key, 4)
    # Module initializes gamma=ones, beta=zeros; perturb so the affine is exercised.
    gamma = 1.0 + 0.1 * jax.random.normal(k_g, (feats,), jnp.float32)
    beta = 0.1 * jax.random.normal(k_b, (feats,), jnp.float32)

    # Small demo shape (full-T block path).
    T = 16
    x = jax.random.normal(k_x, (B, C, F, T), jnp.float32)
    out = jax.block_until_ready(instance_norm(x, gamma, beta))
    ref = jax.block_until_ready(instance_norm_reference(x, gamma, beta))
    assert out.shape == (B, C, F, T)
    max_err = float(jnp.max(jnp.abs(out - ref)))
    assert max_err < 1e-4, f"max abs err {max_err}"

    # 128-multiple T exercises the lane-dense tiled path.
    T2 = 256
    x2 = jax.random.normal(k_x2, (B, C, F, T2), jnp.float32)
    out2 = jax.block_until_ready(instance_norm(x2, gamma, beta))
    ref2 = jax.block_until_ready(instance_norm_reference(x2, gamma, beta))
    max_err2 = float(jnp.max(jnp.abs(out2 - ref2)))
    assert max_err2 < 1e-4, f"max abs err {max_err2}"

    print("KERNEL_OK")
</pallas_src>

<mosaic_0001>
module attributes {stable_mosaic.version = 11 : i64} {
  func.func @_instance_norm_kernel(%arg0: i32, %arg1: i32, %arg2: memref<1x64x16xf32, #tpu.memory_space<vmem>>, %arg3: memref<1x64x1xf32, #tpu.memory_space<vmem>>, %arg4: memref<1x64x1xf32, #tpu.memory_space<vmem>>, %arg5: memref<1x64x16xf32, #tpu.memory_space<vmem>>) attributes {dimension_semantics = [#tpu.dimension_semantics<parallel>, #tpu.dimension_semantics<parallel>], iteration_bounds = array<i64: 2, 1>, scalar_prefetch = 0 : i64, scratch_operands = 0 : i64, tpu.core_type = #tpu.core_type<tc>, window_params = [{transform_indices = @transform_0, window_bounds = array<i64: 1, 64, 16>}, {pipeline_mode = #tpu.pipeline_mode<synchronous>, transform_indices = @transform_1, window_bounds = array<i64: 1, 64, 1>}, {pipeline_mode = #tpu.pipeline_mode<synchronous>, transform_indices = @transform_2, window_bounds = array<i64: 1, 64, 1>}, {transform_indices = @transform_3, window_bounds = array<i64: 1, 64, 16>}]} {
    %c0 = arith.constant 0 : index
    %c0_0 = arith.constant 0 : index
    %c0_1 = arith.constant 0 : index
    %0 = vector.load %arg2[%c0, %c0_0, %c0_1] : memref<1x64x16xf32, #tpu.memory_space<vmem>>, vector<1x64x16xf32>
    %cst = arith.constant dense<0.000000e+00> : vector<1x16xf32>
    %1 = vector.multi_reduction <add>, %0, %cst [1] : vector<1x64x16xf32> to vector<1x16xf32>
    %2 = vector.shape_cast %1 : vector<1x16xf32> to vector<1x1x16xf32>
    %cst_2 = arith.constant 6.400000e+01 : f32
    %3 = vector.broadcast %cst_2 : f32 to vector<1x1x16xf32>
    %4 = arith.divf %2, %3 : vector<1x1x16xf32>
    %5 = vector.broadcast %4 : vector<1x1x16xf32> to vector<1x64x16xf32>
    %6 = arith.subf %0, %5 : vector<1x64x16xf32>
    %7 = arith.mulf %6, %6 : vector<1x64x16xf32>
    %cst_3 = arith.constant dense<0.000000e+00> : vector<1x16xf32>
    %8 = vector.multi_reduction <add>, %7, %cst_3 [1] : vector<1x64x16xf32> to vector<1x16xf32>
    %9 = vector.shape_cast %8 : vector<1x16xf32> to vector<1x1x16xf32>
    %cst_4 = arith.constant 6.400000e+01 : f32
    %10 = vector.broadcast %cst_4 : f32 to vector<1x1x16xf32>
    %11 = arith.divf %9, %10 : vector<1x1x16xf32>
    %cst_5 = arith.constant 1.1920929E-7 : f32
    %12 = vector.broadcast %cst_5 : f32 to vector<1x1x16xf32>
    %13 = arith.addf %11, %12 : vector<1x1x16xf32>
    %14 = math.rsqrt %13 : vector<1x1x16xf32>
    %15 = vector.broadcast %14 : vector<1x1x16xf32> to vector<1x64x16xf32>
    %16 = arith.mulf %6, %15 : vector<1x64x16xf32>
    %c0_6 = arith.constant 0 : index
    %c0_7 = arith.constant 0 : index
    %c0_8 = arith.constant 0 : index
    %17 = vector.load %arg3[%c0_6, %c0_7, %c0_8] : memref<1x64x1xf32, #tpu.memory_space<vmem>>, vector<1x64x1xf32>
    %18 = vector.broadcast %17 : vector<1x64x1xf32> to vector<1x64x16xf32>
    %19 = arith.mulf %16, %18 : vector<1x64x16xf32>
    %c0_9 = arith.constant 0 : index
    %c0_10 = arith.constant 0 : index
    %c0_11 = arith.constant 0 : index
    %20 = vector.load %arg4[%c0_9, %c0_10, %c0_11] : memref<1x64x1xf32, #tpu.memory_space<vmem>>, vector<1x64x1xf32>
    %21 = vector.broadcast %20 : vector<1x64x1xf32> to vector<1x64x16xf32>
    %22 = arith.addf %19, %21 : vector<1x64x16xf32>
    %c0_12 = arith.constant 0 : index
    %c0_13 = arith.constant 0 : index
    %c0_14 = arith.constant 0 : index
    %23 = vector.load %arg5[%c0_12, %c0_13, %c0_14] : memref<1x64x16xf32, #tpu.memory_space<vmem>>, vector<1x64x16xf32>
    tpu.vector_store %arg5[%c0_12, %c0_13, %c0_14], %22 {strides = array<i32>} : memref<1x64x16xf32, #tpu.memory_space<vmem>>, vector<1x64x16xf32>,
    return
  }
  func.func @transform_0(%arg0: i32, %arg1: i32) -> (i32, i32, i32) {
    %c0_i32 = arith.constant 0 : i32
    %c0_i32_0 = arith.constant 0 : i32
    return %arg0, %c0_i32, %arg1 : i32, i32, i32
  }
  func.func @transform_1(%arg0: i32, %arg1: i32) -> (i32, i32, i32) {
    %c0_i32 = arith.constant 0 : i32
    %c0_i32_0 = arith.constant 0 : i32
    %c0_i32_1 = arith.constant 0 : i32
    %c0_i32_2 = arith.constant 0 : i32
    return %c0_i32, %c0_i32_0, %c0_i32_1 : i32, i32, i32
  }
  func.func @transform_2(%arg0: i32, %arg1: i32) -> (i32, i32, i32) {
    %c0_i32 = arith.constant 0 : i32
    %c0_i32_0 = arith.constant 0 : i32
    %c0_i32_1 = arith.constant 0 : i32
    %c0_i32_2 = arith.constant 0 : i32
    return %c0_i32, %c0_i32_0, %c0_i32_1 : i32, i32, i32
  }
  func.func @transform_3(%arg0: i32, %arg1: i32) -> (i32, i32, i32) {
    %c0_i32 = arith.constant 0 : i32
    %c0_i32_0 = arith.constant 0 : i32
    return %arg0, %c0_i32, %arg1 : i32, i32, i32
  }
}

</mosaic_0001>

<llo_original>
// kernel: tpu_custom_call.1
$region0: #{tpu_custom_call.1}
  #allocation0 [shape = 'u32[]', space=smem, size = 0x4, offset = 0x4, fixed_abs, tag = 'smem constant byte address 0x4 - core index']
  #allocation1 [shape = 'u32[144,128]{1,0:T(1,128)}', space=vmem, size = 0x12000, scoped, tag = 'internal scratch']
  %s0 = inlined_call_operand.vmem [shape: f32[2,64,16], index: 0, kind: input, shape index: {}]
  %s1 = inlined_call_operand.vmem [shape: f32[1,64,1], index: 1, kind: input, shape index: {}]
  %s2 = inlined_call_operand.vmem [shape: f32[1,64,1], index: 2, kind: input, shape index: {}]
  %s3 = inlined_call_operand.vmem [shape: f32[2,64,16], index: 3, kind: output, shape index: {}]
  %s4 = sld [smem:[#allocation0]]
  $region45: #{tpu_custom_call.1} parent=0
    _
  %s6 = ssub.s32 1, %s4
  %s7 = scalar_select 0, %s6, %s4
  loop: start=0, step=1, limit=4
  $region2: #{tpu_custom_call.1} parent=0 // loop_pre_header
    _
  $region3: #{tpu_custom_call.1} parent=0 // loop_header
    %s9 = sphi 0, %s13
    %p10 = scmp.ge.s32.totalorder %s9, 4
    %s16 = sphi 0, %s28
    %s17 = sphi 0, %s24
    %s18 = sphi 0, %s16
    %s19 = sphi 0, %s17
    %s20 = sphi 0, %s18
    %s21 = sphi 0, %s19
    %s33 = sphi 0, %s35
    %s36 = sphi 0, %s33
    %s37 = sphi 0, %s36
    %s53 = sphi 0, %s37
    %s57 = sphi 0, %s57
    %s59 = sphi 0, %s57
    %s60 = sphi 0, %s59
    %s74 = sphi 0, %s60
    %s78 = sphi 0, %s78
    %s80 = sphi 0, %s78
    %s81 = sphi 0, %s80
    %s95 = sphi 0, %s81
    %s103 = sphi 0, %s105
    %s106 = sphi 0, %s103
    %s107 = sphi 0, %s106
    %s123 = sphi 0, %s107
  $region4: #{tpu_custom_call.1} parent=0 // loop_header_branch
    %12 = sbr.rel (%p10) target = $region8
  $region5: #{tpu_custom_call.1} parent=0 // loop_body
    %s14 = ssub.s32 %s9, 1
    %s15 = ssub.s32 %s9, 2
    %s22 = sadd.s32 1, %s17
    %p23 = scmp.ge.s32.totalorder %s22, 1
    %s24 = scalar_select %p23, 0, %s22
    %s25 = sadd.s32 1, %s16
    %s26 = scalar_select %p23, %s25, %s16
    %p27 = scmp.ge.s32.totalorder %s26, 2
    %s28 = scalar_select %p27, 0, %s26
    %s29 = ssub.s32 %s16, %s28
    %s30 = ssub.s32 %s17, %s24
    %s31 = sor.u32 %s29, %s30
    %p32 = scmp.eq.s32.totalorder %s31, 0
    %s34 = sadd.s32 %s33, 1
    %s35 = scalar_select %p32, %s33, %s34
    %p38 = pneg %p32
    %p39 = scmp.eq.s32.totalorder %s9, 1
    %p40 = por %p38, %p39
    %p41 = scmp.ne.s32.totalorder %s33, %s36
    %p42 = scmp.eq.s32.totalorder %s9, 0
    %p43 = por %p41, %p42
    %p44 = scmp.ne.s32.totalorder %s33, %s36
    %p45 = scmp.eq.s32.totalorder %s14, 1
    %p46 = por %p44, %p45
    %p47 = scmp.ne.s32.totalorder %s36, %s37
    %p48 = scmp.eq.s32.totalorder %s14, 0
    %p49 = por %p47, %p48
    %p50 = scmp.ne.s32.totalorder %s36, %s37
    %p51 = scmp.eq.s32.totalorder %s15, 1
    %p52 = por %p50, %p51
    %p54 = scmp.ne.s32.totalorder %s37, %s53
    %p55 = scmp.eq.s32.totalorder %s15, 0
    %p56 = por %p54, %p55
    %s58 = sadd.s32 %s57, 1
    %p61 = scmp.eq.s32.totalorder %s9, 1
    %p62 = scmp.ne.s32.totalorder %s57, %s59
    %p63 = scmp.eq.s32.totalorder %s9, 0
    %p64 = por %p62, %p63
    %p65 = scmp.ne.s32.totalorder %s57, %s59
    %p66 = scmp.eq.s32.totalorder %s14, 1
    %p67 = por %p65, %p66
    %p68 = scmp.ne.s32.totalorder %s59, %s60
    %p69 = scmp.eq.s32.totalorder %s14, 0
    %p70 = por %p68, %p69
    %p71 = scmp.ne.s32.totalorder %s59, %s60
    %p72 = scmp.eq.s32.totalorder %s15, 1
    %p73 = por %p71, %p72
    %p75 = scmp.ne.s32.totalorder %s60, %s74
    %p76 = scmp.eq.s32.totalorder %s15, 0
    %p77 = por %p75, %p76
    %s79 = sadd.s32 %s78, 1
    %p82 = scmp.eq.s32.totalorder %s9, 1
    %p83 = scmp.ne.s32.totalorder %s78, %s80
    %p84 = scmp.eq.s32.totalorder %s9, 0
    %p85 = por %p83, %p84
    %p86 = scmp.ne.s32.totalorder %s78, %s80
    %p87 = scmp.eq.s32.totalorder %s14, 1
    %p88 = por %p86, %p87
    %p89 = scmp.ne.s32.totalorder %s80, %s81
    %p90 = scmp.eq.s32.totalorder %s14, 0
    %p91 = por %p89, %p90
    %p92 = scmp.ne.s32.totalorder %s80, %s81
    %p93 = scmp.eq.s32.totalorder %s15, 1
    %p94 = por %p92, %p93
    %p96 = scmp.ne.s32.totalorder %s81, %s95
    %p97 = scmp.eq.s32.totalorder %s15, 0
    %p98 = por %p96, %p97
    %s99 = ssub.s32 %s16, %s28
    %s100 = ssub.s32 %s17, %s24
    %s101 = sor.u32 %s99, %s100
    %p102 = scmp.eq.s32.totalorder %s101, 0
    %s104 = sadd.s32 %s103, 1
    %s105 = scalar_select %p102, %s103, %s104
    %p108 = pneg %p102
    %p109 = scmp.eq.s32.totalorder %s9, 1
    %p110 = por %p108, %p109
    %p111 = scmp.ne.s32.totalorder %s103, %s106
    %p112 = scmp.eq.s32.totalorder %s9, 0
    %p113 = por %p111, %p112
    %p114 = scmp.ne.s32.totalorder %s103, %s106
    %p115 = scmp.eq.s32.totalorder %s14, 1
    %p116 = por %p114, %p115
    %p117 = scmp.ne.s32.totalorder %s106, %s107
    %p118 = scmp.eq.s32.totalorder %s14, 0
    %p119 = por %p117, %p118
    %p120 = scmp.ne.s32.totalorder %s106, %s107
    %p121 = scmp.eq.s32.totalorder %s15, 1
    %p122 = por %p120, %p121
    %p124 = scmp.ne.s32.totalorder %s107, %s123
    %p125 = scmp.eq.s32.totalorder %s15, 0
    %p126 = por %p124, %p125
    %p127 = scmp.le.s32.totalorder 1, %s9
    %p128 = scmp.lt.s32.totalorder %s9, 3
    %p129 = pnand %p127, %p128
    %p130 = pneg %p129
    // Predicated region
    $region9: #{tpu_custom_call.1} parent=5 // pred_check
      _
    $region10: #{tpu_custom_call.1} parent=5 // pred_check_branch
      %132 = sbr.rel (%p129) target = $region12
    $region11: #{tpu_custom_call.1} parent=5 // pred_region
      %s133 = ssub.s32 %s9, 1
      // Predicated region
      $region13: #{tpu_custom_call.1} parent=11 // pred_check
        %p134 = pneg %p70
      $region14: #{tpu_custom_call.1} parent=11 // pred_check_branch
        %136 = sbr.rel (%p134) target = $region16
      $region15: #{tpu_custom_call.1} parent=11 // pred_region
        _
      $region16: #{tpu_custom_call.1} parent=11 // pred_fallthru
        _
      // Predicated region
      $region17: #{tpu_custom_call.1} parent=11 // pred_check
        %p137 = pneg %p91
      $region18: #{tpu_custom_call.1} parent=11 // pred_check_branch
        %139 = sbr.rel (%p137) target = $region20
      $region19: #{tpu_custom_call.1} parent=11 // pred_region
        _
      $region20: #{tpu_custom_call.1} parent=11 // pred_fallthru
        _
    $region12: #{tpu_custom_call.1} parent=5 // pred_fallthru
      _
    %p140 = scmp.lt.s32.totalorder %s9, 2
    // Predicated region
    $region21: #{tpu_custom_call.1} parent=5 // pred_check
      %p141 = pneg %p140
    $region22: #{tpu_custom_call.1} parent=5 // pred_check_branch
      %143 = sbr.rel (%p141) target = $region24
    $region23: #{tpu_custom_call.1} parent=5 // pred_region
      // Predicated region
      $region25: #{tpu_custom_call.1} parent=23 // pred_check
        %p144 = pneg %p43
      $region26: #{tpu_custom_call.1} parent=23 // pred_check_branch
        %146 = sbr.rel (%p144) target = $region28
      $region27: #{tpu_custom_call.1} parent=23 // pred_region
        %p147 = scmp.lt.s32.totalorder %s16, 1
        %s148 = scalar_select %p147, %s16, 1
        %p149 = scmp.lt.s32.totalorder %s17, 0
        %s150 = scalar_select %p149, %s17, 0
        %s151 = smul.addr %s148, 8
        %s152 = sadd.s32 %s150, %s151
        %s153 = smul.addr %s152, 8
        %s154 = scalar_lea.vmem %s0, %s153
      $region28: #{tpu_custom_call.1} parent=23 // pred_fallthru
        _
    $region24: #{tpu_custom_call.1} parent=5 // pred_fallthru
      _
    %p155 = scmp.le.s32.totalorder 1, %s9
    %p156 = scmp.lt.s32.totalorder %s9, 3
    %p157 = pnand %p155, %p156
    %p158 = pneg %p157
    // Predicated region
    $region29: #{tpu_custom_call.1} parent=5 // pred_check
      _
    $region30: #{tpu_custom_call.1} parent=5 // pred_check_branch
      %160 = sbr.rel (%p157) target = $region32
    $region31: #{tpu_custom_call.1} parent=5 // pred_region
      %s161 = ssub.s32 %s9, 1
      %p162 = scmp.lt.s32.totalorder %s18, 1
      %s163 = scalar_select %p162, %s18, 1
      %p164 = scmp.lt.s32.totalorder %s19, 0
      %s165 = scalar_select %p164, %s19, 0
      %s166 = smul.addr %s163, 8
      %s167 = sadd.s32 %s165, %s166
      %s168 = smul.addr %s167, 8
      %s169 = scalar_lea.vmem %s0, %s168
      %p170 = pneg %p49
      %p171 = pneg %p46
      %p172 = pneg %p70
      %p173 = pneg %p67
      %p174 = pneg %p91
      %p175 = pneg %p88
      %p176 = pneg %p119
      %p177 = pneg %p116
      %p178 = scmp.lt.s32.totalorder %s18, 1
      %s179 = scalar_select %p178, %s18, 1
      %p180 = scmp.lt.s32.totalorder %s19, 0
      %s181 = scalar_select %p180, %s19, 0
      %s182 = smul.addr %s179, 8
      %s183 = sadd.s32 %s181, %s182
      %s184 = smul.addr %s183, 8
      %s185 = scalar_lea.vmem %s3, %s184
      %p186 = scmp.lt.s32.totalorder %s18, 1
      %s187 = scalar_select %p186, %s18, 1
      %p188 = scmp.lt.s32.totalorder %s19, 0
      %s189 = scalar_select %p188, %s19, 0
      %s190 = smul.addr %s187, 8
      %s191 = sadd.s32 %s189, %s190
      %s192 = smul.addr %s191, 8
      %s193 = scalar_lea.vmem %s0, %s192
      %p194 = scmp.lt.s32.totalorder %s18, 1
      %s195 = scalar_select %p194, %s18, 1
      %p196 = scmp.lt.s32.totalorder %s19, 0
      %s197 = scalar_select %p196, %s19, 0
      %s198 = smul.addr %s195, 8
      %s199 = sadd.s32 %s197, %s198
      %s200 = smul.addr %s199, 8
      %s201 = scalar_lea.vmem %s3, %s200
      %v202 = vld [vmem:[%s193] sm:$0xff]
      %v203 = vld [vmem:[%s193 + $0x8] sm:$0xff]
      %v204 = vld [vmem:[%s193 + $0x10] sm:$0xff]
      %v205 = vld [vmem:[%s193 + $0x18] sm:$0xff]
      %v206 = vld [vmem:[%s193 + $0x20] sm:$0xff]
      %v207 = vld [vmem:[%s193 + $0x28] sm:$0xff]
      %v208 = vld [vmem:[%s193 + $0x30] sm:$0xff]
      %v209 = vld [vmem:[%s193 + $0x38] sm:$0xff]
      %vm210 = vcmask 130048
      %v211 = vsel %vm210, %v202, 0.0
      %v212 = vsel %vm210, %v203, 0.0
      %v213 = vadd.f32 %v211, %v212
      %v214 = vsel %vm210, %v204, 0.0
      %v215 = vadd.f32 %v213, %v214
      %v216 = vsel %vm210, %v205, 0.0
      %v217 = vadd.f32 %v215, %v216
      %v218 = vsel %vm210, %v206, 0.0
      %v219 = vadd.f32 %v217, %v218
      %v220 = vsel %vm210, %v207, 0.0
      %v221 = vadd.f32 %v219, %v220
      %v222 = vsel %vm210, %v208, 0.0
      %v223 = vadd.f32 %v221, %v222
      %v224 = vsel %vm210, %v209, 0.0
      %v225 = vadd.f32 %v223, %v224
      %v226 = vrot.slane %v225, 4
      %v227 = vadd.f32 %v225, %v226
      %v228 = vrot.slane %v227, 2
      %v229 = vadd.f32 %v227, %v228
      %v230 = vrot.slane %v229, 1
      %v231 = vadd.f32 %v229, %v230
      %v232 = vrcp.pop 64.0
      %v233 = vmul.f32 %v231, %v232
      %v234 = vsub.f32 %v202, %v233
      %v235 = vsub.f32 %v203, %v233
      %v236 = vsub.f32 %v204, %v233
      %v237 = vsub.f32 %v205, %v233
      %v238 = vsub.f32 %v206, %v233
      %v239 = vsub.f32 %v207, %v233
      %v240 = vsub.f32 %v208, %v233
      %v241 = vsub.f32 %v209, %v233
      %v242 = vmul.f32 %v234, %v234
      %v243 = vmul.f32 %v235, %v235
      %v244 = vmul.f32 %v236, %v236
      %v245 = vmul.f32 %v237, %v237
      %v246 = vmul.f32 %v238, %v238
      %v247 = vmul.f32 %v239, %v239
      %v248 = vmul.f32 %v240, %v240
      %v249 = vmul.f32 %v241, %v241
      %v250 = vsel %vm210, %v242, 0.0
      %v251 = vsel %vm210, %v243, 0.0
      %v252 = vadd.f32 %v250, %v251
      %v253 = vsel %vm210, %v244, 0.0
      %v254 = vadd.f32 %v252, %v253
      %v255 = vsel %vm210, %v245, 0.0
      %v256 = vadd.f32 %v254, %v255
      %v257 = vsel %vm210, %v246, 0.0
      %v258 = vadd.f32 %v256, %v257
      %v259 = vsel %vm210, %v247, 0.0
      %v260 = vadd.f32 %v258, %v259
      %v261 = vsel %vm210, %v248, 0.0
      %v262 = vadd.f32 %v260, %v261
      %v263 = vsel %vm210, %v249, 0.0
      %v264 = vadd.f32 %v262, %v263
      %v265 = vrot.slane %v264, 4
      %v266 = vadd.f32 %v264, %v265
      %v267 = vrot.slane %v266, 2
      %v268 = vadd.f32 %v266, %v267
      %v269 = vrot.slane %v268, 1
      %v270 = vadd.f32 %v268, %v269
      %v271 = vmul.f32 %v270, %v232
      %v272 = vadd.f32 %v271, 1.1920929e-07
      %v273 = vrsqrt.pop %v272
      %v274 = vmul.f32 %v234, %v273
      %v275 = vmul.f32 %v235, %v273
      %v276 = vmul.f32 %v236, %v273
      %v277 = vmul.f32 %v237, %v273
      %v278 = vmul.f32 %v238, %v273
      %v279 = vmul.f32 %v239, %v273
      %v280 = vmul.f32 %v240, %v273
      %v281 = vmul.f32 %v241, %v273
      %v282 = vld [vmem:[%s1] sm:$0xff]
      %v283 = vld [vmem:[%s1 + $0x8] sm:$0xff]
      %v284 = vld [vmem:[%s1 + $0x10] sm:$0xff]
      %v285 = vld [vmem:[%s1 + $0x18] sm:$0xff]
      %v286 = vld [vmem:[%s1 + $0x20] sm:$0xff]
      %v287 = vld [vmem:[%s1 + $0x28] sm:$0xff]
      %v288 = vld [vmem:[%s1 + $0x30] sm:$0xff]
      %v289 = vld [vmem:[%s1 + $0x38] sm:$0xff]
      %291 = vset.pattern.permute.xlu0 0
      %292 = vperm.xlu0 %291, %v282
      %v293 = vpop.permute.xlu0 %292
      %296 = vset.pattern.permute.xlu0 0
      %297 = vperm.xlu0 %296, %v283
      %v298 = vpop.permute.xlu0 %297
      %301 = vset.pattern.permute.xlu0 0
      %302 = vperm.xlu0 %301, %v284
      %v303 = vpop.permute.xlu0 %302
      %306 = vset.pattern.permute.xlu0 0
      %307 = vperm.xlu0 %306, %v285
      %v308 = vpop.permute.xlu0 %307
      %311 = vset.pattern.permute.xlu0 0
      %312 = vperm.xlu0 %311, %v286
      %v313 = vpop.permute.xlu0 %312
      %316 = vset.pattern.permute.xlu0 0
      %317 = vperm.xlu0 %316, %v287
      %v318 = vpop.permute.xlu0 %317
      %321 = vset.pattern.permute.xlu0 0
      %322 = vperm.xlu0 %321, %v288
      %v323 = vpop.permute.xlu0 %322
      %326 = vset.pattern.permute.xlu0 0
      %327 = vperm.xlu0 %326, %v289
      %v328 = vpop.permute.xlu0 %327
      %v330 = vmul.f32 %v274, %v293
      %v331 = vmul.f32 %v275, %v298
      %v332 = vmul.f32 %v276, %v303
      %v333 = vmul.f32 %v277, %v308
      %v334 = vmul.f32 %v278, %v313
      %v335 = vmul.f32 %v279, %v318
      %v336 = vmul.f32 %v280, %v323
      %v337 = vmul.f32 %v281, %v328
      %v338 = vld [vmem:[%s2] sm:$0xff]
      %v339 = vld [vmem:[%s2 + $0x8] sm:$0xff]
      %v340 = vld [vmem:[%s2 + $0x10] sm:$0xff]
      %v341 = vld [vmem:[%s2 + $0x18] sm:$0xff]
      %v342 = vld [vmem:[%s2 + $0x20] sm:$0xff]
      %v343 = vld [vmem:[%s2 + $0x28] sm:$0xff]
      %v344 = vld [vmem:[%s2 + $0x30] sm:$0xff]
      %v345 = vld [vmem:[%s2 + $0x38] sm:$0xff]
      %347 = vset.pattern.permute.xlu0 0
      %348 = vperm.xlu0 %347, %v338
      %v349 = vpop.permute.xlu0 %348
      %352 = vset.pattern.permute.xlu0 0
      %353 = vperm.xlu0 %352, %v339
      %v354 = vpop.permute.xlu0 %353
      %357 = vset.pattern.permute.xlu0 0
      %358 = vperm.xlu0 %357, %v340
      %v359 = vpop.permute.xlu0 %358
      %362 = vset.pattern.permute.xlu0 0
      %363 = vperm.xlu0 %362, %v341
      %v364 = vpop.permute.xlu0 %363
      %367 = vset.pattern.permute.xlu0 0
      %368 = vperm.xlu0 %367, %v342
      %v369 = vpop.permute.xlu0 %368
      %372 = vset.pattern.permute.xlu0 0
      %373 = vperm.xlu0 %372, %v343
      %v374 = vpop.permute.xlu0 %373
      %377 = vset.pattern.permute.xlu0 0
      %378 = vperm.xlu0 %377, %v344
      %v379 = vpop.permute.xlu0 %378
      %382 = vset.pattern.permute.xlu0 0
      %383 = vperm.xlu0 %382, %v345
      %v384 = vpop.permute.xlu0 %383
      %v386 = vadd.f32 %v330, %v349
      %v387 = vadd.f32 %v331, %v354
      %v388 = vadd.f32 %v332, %v359
      %v389 = vadd.f32 %v333, %v364
      %v390 = vadd.f32 %v334, %v369
      %v391 = vadd.f32 %v335, %v374
      %v392 = vadd.f32 %v336, %v379
      %v393 = vadd.f32 %v337, %v384
      %394 = vst.msk [vmem:[%s201] sm:$0xff] %vm210, %v386
      %395 = vst.msk [vmem:[%s201 + $0x8] sm:$0xff] %vm210, %v387
      %396 = vst.msk [vmem:[%s201 + $0x10] sm:$0xff] %vm210, %v388
      %397 = vst.msk [vmem:[%s201 + $0x18] sm:$0xff] %vm210, %v389
      %398 = vst.msk [vmem:[%s201 + $0x20] sm:$0xff] %vm210, %v390
      %399 = vst.msk [vmem:[%s201 + $0x28] sm:$0xff] %vm210, %v391
      %400 = vst.msk [vmem:[%s201 + $0x30] sm:$0xff] %vm210, %v392
      %401 = vst.msk [vmem:[%s201 + $0x38] sm:$0xff] %vm210, %v393
      %p402 = scmp.lt.s32.totalorder %s18, 1
      %s403 = scalar_select %p402, %s18, 1
      %p404 = scmp.lt.s32.totalorder %s19, 0
      %s405 = scalar_select %p404, %s19, 0
      %s406 = smul.addr %s403, 8
      %s407 = sadd.s32 %s405, %s406
      %s408 = smul.addr %s407, 8
      %s409 = scalar_lea.vmem %s3, %s408
      // Predicated region
      $region33: #{tpu_custom_call.1} parent=31 // pred_check
        %p410 = pneg %p116
      $region34: #{tpu_custom_call.1} parent=31 // pred_check_branch
        %412 = sbr.rel (%p410) target = $region36
      $region35: #{tpu_custom_call.1} parent=31 // pred_region
        _
      $region36: #{tpu_custom_call.1} parent=31 // pred_fallthru
        _
    $region32: #{tpu_custom_call.1} parent=5 // pred_fallthru
      _
    %p413 = scmp.le.s32.totalorder 2, %s9
    // Predicated region
    $region37: #{tpu_custom_call.1} parent=5 // pred_check
      %p414 = pneg %p413
    $region38: #{tpu_custom_call.1} parent=5 // pred_check_branch
      %416 = sbr.rel (%p414) target = $region40
    $region39: #{tpu_custom_call.1} parent=5 // pred_region
      %s417 = ssub.s32 %s9, 2
      // Predicated region
      $region41: #{tpu_custom_call.1} parent=39 // pred_check
        %p418 = pneg %p122
      $region42: #{tpu_custom_call.1} parent=39 // pred_check_branch
        %420 = sbr.rel (%p418) target = $region44
      $region43: #{tpu_custom_call.1} parent=39 // pred_region
        %p421 = scmp.lt.s32.totalorder %s20, 1
        %s422 = scalar_select %p421, %s20, 1
        %p423 = scmp.lt.s32.totalorder %s21, 0
        %s424 = scalar_select %p423, %s21, 0
        %s425 = smul.addr %s422, 8
        %s426 = sadd.s32 %s424, %s425
        %s427 = smul.addr %s426, 8
        %s428 = scalar_lea.vmem %s3, %s427
      $region44: #{tpu_custom_call.1} parent=39 // pred_fallthru
        _
    $region40: #{tpu_custom_call.1} parent=5 // pred_fallthru
      _
  $region6: #{tpu_custom_call.1} parent=0 // loop_footer
    %s13 = sadd.s32 1, %s9
  $region7: #{tpu_custom_call.1} parent=0 // loop_footer_branch
    %8 = sbr.rel target = $region3
  $region8: #{tpu_custom_call.1} parent=0 // loop_exit
    _

</llo_original>
